<compile_context>
chip_gen: v7x
topology: tpu7x:2x2x1
jax: 0.10.0
libtpu: 0.0.40
codegen_flags: <defaults>
</compile_context>

<pallas_src>
import jax
import jax.numpy as jnp
from jax.experimental import pallas as pl
from jax.experimental.pallas import tpu as pltpu


# ----------------------------------------------------------------------------
# Kernel body
# ----------------------------------------------------------------------------
def aggregate_kernel(va_ref, vb_ref,
                     w1a_ref, w1b_ref, b1_ref,
                     w2_ref, b2_ref,
                     w3_ref, b3_ref,
                     out_ref,
                     acc_a, acc_b):
    s = pl.program_id(1)

    @pl.when(s == 0)
    def _init():
        acc_a[...] = jnp.zeros_like(acc_a)
        acc_b[...] = jnp.zeros_like(acc_b)

    # Streaming reduction over the (packed, possibly zero-padded) seq axis.
    # Inputs may stream in bf16; accumulate in f32 (upcast-then-add keeps v5e
    # off its missing bf16 VALU path and stays hidden under DMA).
    acc_a[...] += jnp.sum(va_ref[...].astype(jnp.float32), axis=1)
    acc_b[...] += jnp.sum(vb_ref[...].astype(jnp.float32), axis=1)

    @pl.when(s == pl.num_programs(1) - 1)
    def _epilogue():
        # cat([va, vb], 1) @ W1 == va @ W1[:F] + vb @ W1[F:]; the k-way lane
        # fold is already baked into w1a/w1b (vertically tiled k times).
        h1 = (jnp.dot(acc_a[...], w1a_ref[...], preferred_element_type=jnp.float32)
              + jnp.dot(acc_b[...], w1b_ref[...], preferred_element_type=jnp.float32)
              + b1_ref[...])
        h1 = jnp.maximum(h1, 0.0)

        h2 = jnp.dot(h1, w2_ref[...], preferred_element_type=jnp.float32) + b2_ref[...]
        h2 = jnp.maximum(h2, 0.0)

        out_ref[...] = (jnp.dot(h2, w3_ref[...], preferred_element_type=jnp.float32)
                        + b3_ref[...]).astype(out_ref.dtype)


# ----------------------------------------------------------------------------
# Helpers
# ----------------------------------------------------------------------------
def _round_up(x, m):
    return ((x + m - 1) // m) * m


def _vmem_capacity_bytes():
    """Physical per-core VMEM; conservative (v7x-safe) fallback if unknown."""
    try:
        info = pltpu.get_tpu_info()
        cap = getattr(info, "vmem_capacity_bytes", None)
        if cap:
            return int(cap)
    except Exception:
        pass
    return 64 * 1024 * 1024


def _const_spec(arr):
    """VMEM-resident constant operand; single-buffered (index never changes)."""
    idx = lambda b, s: (0,) * arr.ndim
    try:
        return pl.BlockSpec(arr.shape, idx, pipeline_mode=pl.Buffered(1))
    except Exception:
        return pl.BlockSpec(arr.shape, idx)


def _choose_batch_tile(B):
    """Returns (B_padded, TB).  Keeps >=2 batch tiles for megacore when B is
    large enough; TB is a multiple of 8 (or the full extent for tiny B)."""
    if B <= 8:
        return B, B
    cap = min(64, max(8, B // 2))
    for t in range(cap - cap % 8, 7, -8):
        if B % t == 0:
            return B, t
    tb = 8
    return _round_up(B, tb), tb


def _choose_seq_tile(SP, TB, PF, in_bytes, input_budget):
    """Returns (SP_padded, TS).  Sizes the seq tile so that
    2 inputs x 2 pipeline buffers x TB*TS*PF*in_bytes <= input_budget, capped
    at TB*TS ~= 16k elements (per-step DMA well above the 0.35us overhead
    floor on every generation).  Never falls back to an over-budget
    full-extent tile; pads SP with zeros instead."""
    max_elems = input_budget // (2 * 2 * PF * in_bytes)     # bound on TB*TS
    max_elems = max(64, min(max_elems, 16 * 1024))
    ts_cap = max(8, max_elems // max(TB, 1))
    if SP <= ts_cap:
        return SP, SP                                       # full extent fits
    ts = max(8, (ts_cap // 8) * 8)
    return _round_up(SP, ts), ts


# ----------------------------------------------------------------------------
# One-time parameter packing (hoisted out of the per-call path)
# ----------------------------------------------------------------------------
def pack_params(params, feature_dim, seq_len):
    """Pack raw PyTorch-layout weights once per parameter set.
    params: w1 (2F,H), b1 (H,), w2 (H,H), b2 (H,), w3 (H,O), b3 (O,)."""
    F, S = feature_dim, seq_len
    w1, b1 = params["w1"], params["b1"]
    w2, b2 = params["w2"], params["b2"]
    w3, b3 = params["w3"], params["b3"]
    H = w2.shape[0]
    O = w3.shape[1]
    assert w1.shape[0] == 2 * F, "w1 must have 2*F input rows"

    # Lane-packing factor: (B, S, F) -> (B, S/k, k*F) with k*F = 128 if possible.
    if F < 128 and 128 % F == 0:
        k = 128 // F
        while k > 1 and S % k != 0:
            k //= 2
    else:
        k = 1
    PF = F * k

    HP = _round_up(max(H, 128), 128)
    OP = _round_up(max(O, 128), 128)
    f32 = jnp.float32

    w1a = jnp.tile(w1[:F].astype(f32), (k, 1))              # (PF, H)
    w1b = jnp.tile(w1[F:].astype(f32), (k, 1))              # (PF, H)
    w1a_p = jnp.zeros((PF, HP), f32).at[:, :H].set(w1a)
    w1b_p = jnp.zeros((PF, HP), f32).at[:, :H].set(w1b)
    b1_p = jnp.zeros((1, HP), f32).at[0, :H].set(b1.astype(f32).reshape(-1))
    w2_p = jnp.zeros((HP, HP), f32).at[:H, :H].set(w2.astype(f32))
    b2_p = jnp.zeros((1, HP), f32).at[0, :H].set(b2.astype(f32).reshape(-1))
    w3_p = jnp.zeros((HP, OP), f32).at[:H, :O].set(w3.astype(f32))
    b3_p = jnp.zeros((1, OP), f32).at[0, :O].set(b3.astype(f32).reshape(-1))

    return {
        "weights": (w1a_p, w1b_p, b1_p, w2_p, b2_p, w3_p, b3_p),
        "meta": {"F": F, "S": S, "k": k, "PF": PF, "H": H, "HP": HP,
                 "O": O, "OP": OP},
    }


# ----------------------------------------------------------------------------
# Forward wrapper
# ----------------------------------------------------------------------------
def aggregate_forward(V_A, V_B, packed, *, stream_dtype=jnp.bfloat16):
    """V_A, V_B: (B, S, F).  packed: output of pack_params().
    stream_dtype: dtype used to stream V_A/V_B through HBM->VMEM (bf16 halves
    HBM traffic on this bandwidth-bound kernel); accumulation is always f32."""
    meta = packed["meta"]
    w1a_p, w1b_p, b1_p, w2_p, b2_p, w3_p, b3_p = packed["weights"]
    weights = (w1a_p, w1b_p, b1_p, w2_p, b2_p, w3_p, b3_p)

    B, S, F = V_A.shape
    assert V_B.shape == (B, S, F)
    assert F == meta["F"] and S == meta["S"], "pack_params shape mismatch"
    k, PF, OP, O = meta["k"], meta["PF"], meta["OP"], meta["O"]
    SP = S // k

    # Lane packing + streaming dtype.
    V_Ap = V_A.astype(stream_dtype).reshape(B, SP, PF)
    V_Bp = V_B.astype(stream_dtype).reshape(B, SP, PF)

    # --- VMEM-budgeted tile choice (per-generation via physical VMEM size).
    phys_vmem = _vmem_capacity_bytes()
    vmem_limit = min((phys_vmem * 3) // 4, 100 * 1024 * 1024)   # 48MiB v7x, 96MiB v5e/v6e

    B_pad, TB = _choose_batch_tile(B)
    in_bytes = jnp.dtype(stream_dtype).itemsize
    weight_bytes = sum(int(w.size) * w.dtype.itemsize for w in weights)  # Buffered(1)
    out_bytes = 2 * TB * OP * 4                 # double-buffered output blocks
    scratch_bytes = 2 * TB * PF * 4             # acc_a + acc_b
    margin = 4 * 1024 * 1024
    input_budget = max(
        vmem_limit - weight_bytes - out_bytes - scratch_bytes - margin,
        2 * 1024 * 1024)
    SP_pad, TS = _choose_seq_tile(SP, TB, PF, in_bytes, input_budget)

    # Zero-padding: exact for the seq sum; padded batch rows are sliced off.
    if B_pad != B or SP_pad != SP:
        pad = ((0, B_pad - B), (0, SP_pad - SP), (0, 0))
        V_Ap = jnp.pad(V_Ap, pad)
        V_Bp = jnp.pad(V_Bp, pad)

    grid = (B_pad // TB, SP_pad // TS)
    f32 = jnp.float32

    out_padded = pl.pallas_call(
        aggregate_kernel,
        out_shape=jax.ShapeDtypeStruct((B_pad, OP), f32),
        grid=grid,
        in_specs=[
            pl.BlockSpec((TB, TS, PF), lambda b, s: (b, s, 0)),   # V_A tiles
            pl.BlockSpec((TB, TS, PF), lambda b, s: (b, s, 0)),   # V_B tiles
            _const_spec(w1a_p), _const_spec(w1b_p), _const_spec(b1_p),
            _const_spec(w2_p), _const_spec(b2_p),
            _const_spec(w3_p), _const_spec(b3_p),
        ],
        out_specs=pl.BlockSpec((TB, OP), lambda b, s: (b, 0)),
        scratch_shapes=[
            pltpu.VMEM((TB, PF), jnp.float32),   # acc for V_A branch
            pltpu.VMEM((TB, PF), jnp.float32),   # acc for V_B branch
        ],
        compiler_params=pltpu.CompilerParams(
            dimension_semantics=("parallel", "arbitrary"),
            vmem_limit_bytes=int(vmem_limit)),
    )(V_Ap, V_Bp, *weights)

    return out_padded[:B, :O]


# ----------------------------------------------------------------------------
# Reference / init (pure JAX, mirrors the PyTorch module in eval mode)
# ----------------------------------------------------------------------------
def init_params(key, num_inputs, num_hiddens, num_outputs):
    k1, k2, k3, k4, k5, k6 = jax.random.split(key, 6)
    s1 = 1.0 / jnp.sqrt(num_inputs)
    s2 = 1.0 / jnp.sqrt(num_hiddens)
    return {
        "w1": jax.random.uniform(k1, (num_inputs, num_hiddens), jnp.float32, -s1, s1),
        "b1": jax.random.uniform(k2, (num_hiddens,), jnp.float32, -s1, s1),
        "w2": jax.random.uniform(k3, (num_hiddens, num_hiddens), jnp.float32, -s2, s2),
        "b2": jax.random.uniform(k4, (num_hiddens,), jnp.float32, -s2, s2),
        "w3": jax.random.uniform(k5, (num_hiddens, num_outputs), jnp.float32, -s2, s2),
        "b3": jax.random.uniform(k6, (num_outputs,), jnp.float32, -s2, s2),
    }


def reference_forward(V_A, V_B, params):
    va = V_A.sum(axis=1)
    vb = V_B.sum(axis=1)
    x = jnp.concatenate([va, vb], axis=1)
    h = jnp.maximum(x @ params["w1"] + params["b1"], 0.0)
    h = jnp.maximum(h @ params["w2"] + params["b2"], 0.0)
    return h @ params["w3"] + params["b3"]


if __name__ == "__main__":
    # Small shapes: batch=2, seq=8, per-branch feature=32
    # -> num_inputs = 2 * 32 = 64, num_hiddens = 32, num_outputs = 3
    B, S, F = 2, 8, 32
    num_inputs, num_hiddens, num_outputs = 2 * F, 32, 3

    key = jax.random.PRNGKey(0)
    ka, kb, kp = jax.random.split(key, 3)
    V_A = jax.random.normal(ka, (B, S, F), jnp.float32)
    V_B = jax.random.normal(kb, (B, S, F), jnp.float32)
    params = init_params(kp, num_inputs, num_hiddens, num_outputs)

    # One-time weight packing (hoisted out of the forward path).
    packed = pack_params(params, F, S)

    ref = reference_forward(V_A, V_B, params)

    # 1) Exact-precision path (f32 streaming): matches the PyTorch module.
    out_f32 = jax.block_until_ready(
        aggregate_forward(V_A, V_B, packed, stream_dtype=jnp.float32))
    assert out_f32.shape == (B, num_outputs)
    assert jnp.allclose(out_f32, ref, atol=1e-4, rtol=1e-4)

    # 2) Bandwidth-optimized path (bf16 streaming, f32 accumulation) -- the
    #    production default; tolerance reflects the bf16 input cast only.
    out_bf16 = jax.block_until_ready(
        aggregate_forward(V_A, V_B, packed, stream_dtype=jnp.bfloat16))
    assert out_bf16.shape == (B, num_outputs)
    assert jnp.allclose(out_bf16, ref, atol=5e-2, rtol=5e-2)

    print("KERNEL_OK")
</pallas_src>

<mosaic_0001>
module attributes {stable_mosaic.version = 11 : i64} {
  func.func @aggregate_kernel(%arg0: i32, %arg1: i32, %arg2: memref<2x2x128xf32, #tpu.memory_space<vmem>>, %arg3: memref<2x2x128xf32, #tpu.memory_space<vmem>>, %arg4: memref<128x128xf32, #tpu.memory_space<vmem>>, %arg5: memref<128x128xf32, #tpu.memory_space<vmem>>, %arg6: memref<1x128xf32, #tpu.memory_space<vmem>>, %arg7: memref<128x128xf32, #tpu.memory_space<vmem>>, %arg8: memref<1x128xf32, #tpu.memory_space<vmem>>, %arg9: memref<128x128xf32, #tpu.memory_space<vmem>>, %arg10: memref<1x128xf32, #tpu.memory_space<vmem>>, %arg11: memref<2x128xf32, #tpu.memory_space<vmem>>, %arg12: memref<2x128xf32, #tpu.memory_space<vmem>>, %arg13: memref<2x128xf32, #tpu.memory_space<vmem>>) attributes {dimension_semantics = [#tpu.dimension_semantics<parallel>, #tpu.dimension_semantics<arbitrary>], iteration_bounds = array<i64: 1, 1>, scalar_prefetch = 0 : i64, scratch_operands = 2 : i64, tpu.core_type = #tpu.core_type<tc>, window_params = [{transform_indices = @transform_0, window_bounds = array<i64: 2, 2, 128>}, {transform_indices = @transform_1, window_bounds = array<i64: 2, 2, 128>}, {pipeline_mode = #tpu.pipeline_mode<synchronous>, transform_indices = @transform_2, window_bounds = array<i64: 128, 128>}, {pipeline_mode = #tpu.pipeline_mode<synchronous>, transform_indices = @transform_3, window_bounds = array<i64: 128, 128>}, {pipeline_mode = #tpu.pipeline_mode<synchronous>, transform_indices = @transform_4, window_bounds = array<i64: 1, 128>}, {pipeline_mode = #tpu.pipeline_mode<synchronous>, transform_indices = @transform_5, window_bounds = array<i64: 128, 128>}, {pipeline_mode = #tpu.pipeline_mode<synchronous>, transform_indices = @transform_6, window_bounds = array<i64: 1, 128>}, {pipeline_mode = #tpu.pipeline_mode<synchronous>, transform_indices = @transform_7, window_bounds = array<i64: 128, 128>}, {pipeline_mode = #tpu.pipeline_mode<synchronous>, transform_indices = @transform_8, window_bounds = array<i64: 1, 128>}, {transform_indices = @transform_9, window_bounds = array<i64: 2, 128>}]} {
    %c0_i32 = arith.constant 0 : i32
    %0 = arith.cmpi eq, %arg1, %c0_i32 : i32
    %1 = arith.extui %0 : i1 to i32
    %c0_i32_0 = arith.constant 0 : i32
    %2 = arith.cmpi ne, %1, %c0_i32_0 : i32
    scf.if %2 {
      %cst_17 = arith.constant 0.000000e+00 : f32
      %16 = vector.broadcast %cst_17 : f32 to vector<2x128xf32>
      %c0_18 = arith.constant 0 : index
      %c0_19 = arith.constant 0 : index
      %17 = vector.load %arg12[%c0_18, %c0_19] : memref<2x128xf32, #tpu.memory_space<vmem>>, vector<2x128xf32>
      tpu.vector_store %arg12[%c0_18, %c0_19], %16 {strides = array<i32>} : memref<2x128xf32, #tpu.memory_space<vmem>>, vector<2x128xf32>,
      %cst_20 = arith.constant 0.000000e+00 : f32
      %18 = vector.broadcast %cst_20 : f32 to vector<2x128xf32>
      %c0_21 = arith.constant 0 : index
      %c0_22 = arith.constant 0 : index
      %19 = vector.load %arg13[%c0_21, %c0_22] : memref<2x128xf32, #tpu.memory_space<vmem>>, vector<2x128xf32>
      tpu.vector_store %arg13[%c0_21, %c0_22], %18 {strides = array<i32>} : memref<2x128xf32, #tpu.memory_space<vmem>>, vector<2x128xf32>,
    } else {
    }
    %c0 = arith.constant 0 : index
    %c0_1 = arith.constant 0 : index
    %3 = vector.load %arg12[%c0, %c0_1] : memref<2x128xf32, #tpu.memory_space<vmem>>, vector<2x128xf32>
    %c0_2 = arith.constant 0 : index
    %c0_3 = arith.constant 0 : index
    %c0_4 = arith.constant 0 : index
    %4 = vector.load %arg2[%c0_2, %c0_3, %c0_4] : memref<2x2x128xf32, #tpu.memory_space<vmem>>, vector<2x2x128xf32>
    %cst = arith.constant dense<0.000000e+00> : vector<2x128xf32>
    %5 = vector.multi_reduction <add>, %4, %cst [1] : vector<2x2x128xf32> to vector<2x128xf32>
    %6 = arith.addf %3, %5 : vector<2x128xf32>
    %c0_5 = arith.constant 0 : index
    %c0_6 = arith.constant 0 : index
    %7 = vector.load %arg12[%c0_5, %c0_6] : memref<2x128xf32, #tpu.memory_space<vmem>>, vector<2x128xf32>
    tpu.vector_store %arg12[%c0_5, %c0_6], %6 {strides = array<i32>} : memref<2x128xf32, #tpu.memory_space<vmem>>, vector<2x128xf32>,
    %c0_7 = arith.constant 0 : index
    %c0_8 = arith.constant 0 : index
    %8 = vector.load %arg13[%c0_7, %c0_8] : memref<2x128xf32, #tpu.memory_space<vmem>>, vector<2x128xf32>
    %c0_9 = arith.constant 0 : index
    %c0_10 = arith.constant 0 : index
    %c0_11 = arith.constant 0 : index
    %9 = vector.load %arg3[%c0_9, %c0_10, %c0_11] : memref<2x2x128xf32, #tpu.memory_space<vmem>>, vector<2x2x128xf32>
    %cst_12 = arith.constant dense<0.000000e+00> : vector<2x128xf32>
    %10 = vector.multi_reduction <add>, %9, %cst_12 [1] : vector<2x2x128xf32> to vector<2x128xf32>
    %11 = arith.addf %8, %10 : vector<2x128xf32>
    %c0_13 = arith.constant 0 : index
    %c0_14 = arith.constant 0 : index
    %12 = vector.load %arg13[%c0_13, %c0_14] : memref<2x128xf32, #tpu.memory_space<vmem>>, vector<2x128xf32>
    tpu.vector_store %arg13[%c0_13, %c0_14], %11 {strides = array<i32>} : memref<2x128xf32, #tpu.memory_space<vmem>>, vector<2x128xf32>,
    %c0_i32_15 = arith.constant 0 : i32
    %13 = arith.cmpi eq, %arg1, %c0_i32_15 : i32
    %14 = arith.extui %13 : i1 to i32
    %c0_i32_16 = arith.constant 0 : i32
    %15 = arith.cmpi ne, %14, %c0_i32_16 : i32
    scf.if %15 {
      %c0_17 = arith.constant 0 : index
      %c0_18 = arith.constant 0 : index
      %16 = vector.load %arg12[%c0_17, %c0_18] : memref<2x128xf32, #tpu.memory_space<vmem>>, vector<2x128xf32>
      %c0_19 = arith.constant 0 : index
      %c0_20 = arith.constant 0 : index
      %17 = vector.load %arg4[%c0_19, %c0_20] : memref<128x128xf32, #tpu.memory_space<vmem>>, vector<128x128xf32>
      %cst_21 = arith.constant dense<0.000000e+00> : vector<2x128xf32>
      %18 = tpu.matmul %16, %17, %cst_21 {dimension_numbers = #tpu.dot_dimension_numbers<[1], [0], [0], [1], [0, 0, 1, 1], [], []>} : vector<2x128xf32>, vector<128x128xf32>, vector<2x128xf32> -> vector<2x128xf32>
      %c0_22 = arith.constant 0 : index
      %c0_23 = arith.constant 0 : index
      %19 = vector.load %arg13[%c0_22, %c0_23] : memref<2x128xf32, #tpu.memory_space<vmem>>, vector<2x128xf32>
      %c0_24 = arith.constant 0 : index
      %c0_25 = arith.constant 0 : index
      %20 = vector.load %arg5[%c0_24, %c0_25] : memref<128x128xf32, #tpu.memory_space<vmem>>, vector<128x128xf32>
      %cst_26 = arith.constant dense<0.000000e+00> : vector<2x128xf32>
      %21 = tpu.matmul %19, %20, %cst_26 {dimension_numbers = #tpu.dot_dimension_numbers<[1], [0], [0], [1], [0, 0, 1, 1], [], []>} : vector<2x128xf32>, vector<128x128xf32>, vector<2x128xf32> -> vector<2x128xf32>
      %22 = arith.addf %18, %21 : vector<2x128xf32>
      %c0_27 = arith.constant 0 : index
      %c0_28 = arith.constant 0 : index
      %23 = vector.load %arg6[%c0_27, %c0_28] : memref<1x128xf32, #tpu.memory_space<vmem>>, vector<1x128xf32>
      %24 = vector.broadcast %23 : vector<1x128xf32> to vector<2x128xf32>
      %25 = arith.addf %22, %24 : vector<2x128xf32>
      %cst_29 = arith.constant 0.000000e+00 : f32
      %26 = vector.broadcast %cst_29 : f32 to vector<2x128xf32>
      %27 = arith.maximumf %25, %26 : vector<2x128xf32>
      %c0_30 = arith.constant 0 : index
      %c0_31 = arith.constant 0 : index
      %28 = vector.load %arg7[%c0_30, %c0_31] : memref<128x128xf32, #tpu.memory_space<vmem>>, vector<128x128xf32>
      %cst_32 = arith.constant dense<0.000000e+00> : vector<2x128xf32>
      %29 = tpu.matmul %27, %28, %cst_32 {dimension_numbers = #tpu.dot_dimension_numbers<[1], [0], [0], [1], [0, 0, 1, 1], [], []>} : vector<2x128xf32>, vector<128x128xf32>, vector<2x128xf32> -> vector<2x128xf32>
      %c0_33 = arith.constant 0 : index
      %c0_34 = arith.constant 0 : index
      %30 = vector.load %arg8[%c0_33, %c0_34] : memref<1x128xf32, #tpu.memory_space<vmem>>, vector<1x128xf32>
      %31 = vector.broadcast %30 : vector<1x128xf32> to vector<2x128xf32>
      %32 = arith.addf %29, %31 : vector<2x128xf32>
      %cst_35 = arith.constant 0.000000e+00 : f32
      %33 = vector.broadcast %cst_35 : f32 to vector<2x128xf32>
      %34 = arith.maximumf %32, %33 : vector<2x128xf32>
      %c0_36 = arith.constant 0 : index
      %c0_37 = arith.constant 0 : index
      %35 = vector.load %arg9[%c0_36, %c0_37] : memref<128x128xf32, #tpu.memory_space<vmem>>, vector<128x128xf32>
      %cst_38 = arith.constant dense<0.000000e+00> : vector<2x128xf32>
      %36 = tpu.matmul %34, %35, %cst_38 {dimension_numbers = #tpu.dot_dimension_numbers<[1], [0], [0], [1], [0, 0, 1, 1], [], []>} : vector<2x128xf32>, vector<128x128xf32>, vector<2x128xf32> -> vector<2x128xf32>
      %c0_39 = arith.constant 0 : index
      %c0_40 = arith.constant 0 : index
      %37 = vector.load %arg10[%c0_39, %c0_40] : memref<1x128xf32, #tpu.memory_space<vmem>>, vector<1x128xf32>
      %38 = vector.broadcast %37 : vector<1x128xf32> to vector<2x128xf32>
      %39 = arith.addf %36, %38 : vector<2x128xf32>
      %c0_41 = arith.constant 0 : index
      %c0_42 = arith.constant 0 : index
      %40 = vector.load %arg11[%c0_41, %c0_42] : memref<2x128xf32, #tpu.memory_space<vmem>>, vector<2x128xf32>
      tpu.vector_store %arg11[%c0_41, %c0_42], %39 {strides = array<i32>} : memref<2x128xf32, #tpu.memory_space<vmem>>, vector<2x128xf32>,
    } else {
    }
    return
  }
  func.func @transform_0(%arg0: i32, %arg1: i32) -> (i32, i32, i32) {
    %c0_i32 = arith.constant 0 : i32
    %c0_i32_0 = arith.constant 0 : i32
    return %arg0, %arg1, %c0_i32 : i32, i32, i32
  }
  func.func @transform_1(%arg0: i32, %arg1: i32) -> (i32, i32, i32) {
    %c0_i32 = arith.constant 0 : i32
    %c0_i32_0 = arith.constant 0 : i32
    return %arg0, %arg1, %c0_i32 : i32, i32, i32
  }
  func.func @transform_2(%arg0: i32, %arg1: i32) -> (i32, i32) {
    %c0_i32 = arith.constant 0 : i32
    %c0_i32_0 = arith.constant 0 : i32
    %c0_i32_1 = arith.constant 0 : i32
    return %c0_i32, %c0_i32_0 : i32, i32
  }
  func.func @transform_3(%arg0: i32, %arg1: i32) -> (i32, i32) {
    %c0_i32 = arith.constant 0 : i32
    %c0_i32_0 = arith.constant 0 : i32
    %c0_i32_1 = arith.constant 0 : i32
    return %c0_i32, %c0_i32_0 : i32, i32
  }
  func.func @transform_4(%arg0: i32, %arg1: i32) -> (i32, i32) {
    %c0_i32 = arith.constant 0 : i32
    %c0_i32_0 = arith.constant 0 : i32
    %c0_i32_1 = arith.constant 0 : i32
    return %c0_i32, %c0_i32_0 : i32, i32
  }
  func.func @transform_5(%arg0: i32, %arg1: i32) -> (i32, i32) {
    %c0_i32 = arith.constant 0 : i32
    %c0_i32_0 = arith.constant 0 : i32
    %c0_i32_1 = arith.constant 0 : i32
    return %c0_i32, %c0_i32_0 : i32, i32
  }
  func.func @transform_6(%arg0: i32, %arg1: i32) -> (i32, i32) {
    %c0_i32 = arith.constant 0 : i32
    %c0_i32_0 = arith.constant 0 : i32
    %c0_i32_1 = arith.constant 0 : i32
    return %c0_i32, %c0_i32_0 : i32, i32
  }
  func.func @transform_7(%arg0: i32, %arg1: i32) -> (i32, i32) {
    %c0_i32 = arith.constant 0 : i32
    %c0_i32_0 = arith.constant 0 : i32
    %c0_i32_1 = arith.constant 0 : i32
    return %c0_i32, %c0_i32_0 : i32, i32
  }
  func.func @transform_8(%arg0: i32, %arg1: i32) -> (i32, i32) {
    %c0_i32 = arith.constant 0 : i32
    %c0_i32_0 = arith.constant 0 : i32
    %c0_i32_1 = arith.constant 0 : i32
    return %c0_i32, %c0_i32_0 : i32, i32
  }
  func.func @transform_9(%arg0: i32, %arg1: i32) -> (i32, i32) {
    %c0_i32 = arith.constant 0 : i32
    %c0_i32_0 = arith.constant 0 : i32
    return %arg0, %c0_i32 : i32, i32
  }
}

</mosaic_0001>

<llo_original>
// kernel: tpu_custom_call.1
$region0: #{tpu_custom_call.1}
  #allocation0 [shape = 'u32[]', space=smem, size = 0x4, offset = 0x4, fixed_abs, tag = 'smem constant byte address 0x4 - core index']
  #allocation1 [shape = 'u32[144,128]{1,0:T(1,128)}', space=vmem, size = 0x12000, scoped, tag = 'internal scratch']
  #allocation2 [shape = 'f32[2,128]{1,0:T(2,128)}', space=vmem, size = 0x400, scoped, tag = 'scratch operand']
  #allocation3 [shape = 'f32[2,128]{1,0:T(2,128)}', space=vmem, size = 0x400, scoped, tag = 'scratch operand']
  %s0 = inlined_call_operand.hbm [shape: f32[2,2,128], index: 0, kind: input, shape index: {}]
  %s1 = inlined_call_operand.hbm [shape: f32[2,2,128], index: 1, kind: input, shape index: {}]
  %s2 = inlined_call_operand.hbm [shape: f32[128,128], index: 2, kind: input, shape index: {}]
  %s3 = inlined_call_operand.hbm [shape: f32[128,128], index: 3, kind: input, shape index: {}]
  %s4 = inlined_call_operand.vmem [shape: f32[1,128], index: 4, kind: input, shape index: {}]
  %s5 = inlined_call_operand.hbm [shape: f32[128,128], index: 5, kind: input, shape index: {}]
  %s6 = inlined_call_operand.vmem [shape: f32[1,128], index: 6, kind: input, shape index: {}]
  %s7 = inlined_call_operand.hbm [shape: f32[128,128], index: 7, kind: input, shape index: {}]
  %s8 = inlined_call_operand.vmem [shape: f32[1,128], index: 8, kind: input, shape index: {}]
  %s9 = inlined_call_operand.hbm [shape: f32[2,128], index: 9, kind: output, shape index: {}]
  %s10 = sld [smem:[#allocation0]]
  $region78: #{tpu_custom_call.1} parent=0
    _
  %s12 = ssub.s32 1, %s10
  %s13 = scalar_select 0, %s12, %s10
  $region1: #{tpu_custom_call.1} parent=0
    #allocation4 [shape = 'u8[2048]{0}', space=vmem, size = 0x800, scoped, tag = 'input window, operand 0, single buffered']
    #allocation5 [shape = 's32[1]{0}', space=sflag, size = 0x4, scoped, tag = 'scoped memory for tpu_custom_call.1']
    #allocation6 [shape = 's32[1]{0}', space=sflag, size = 0x4, scoped, tag = 'scoped memory for tpu_custom_call.1']
    #allocation7 [shape = 'u8[2048]{0}', space=vmem, size = 0x800, scoped, tag = 'input window, operand 1, single buffered']
    #allocation8 [shape = 's32[1]{0}', space=sflag, size = 0x4, scoped, tag = 'scoped memory for tpu_custom_call.1']
    #allocation9 [shape = 'u8[65536]{0}', space=vmem, size = 0x10000, scoped, tag = 'input window, operand 2, single buffered']
    #allocation10 [shape = 'u8[65536]{0}', space=vmem, size = 0x10000, scoped, tag = 'input window, operand 3, single buffered']
    #allocation11 [shape = 's32[1]{0}', space=sflag, size = 0x4, scoped, tag = 'scoped memory for tpu_custom_call.1']
    #allocation12 [shape = 'u8[65536]{0}', space=vmem, size = 0x10000, scoped, tag = 'input window, operand 5, single buffered']
    #allocation13 [shape = 'u8[65536]{0}', space=vmem, size = 0x10000, scoped, tag = 'input window, operand 7, single buffered']
    #allocation14 [shape = 's32[1]{0}', space=sflag, size = 0x4, scoped, tag = 'scoped memory for tpu_custom_call.1']
    #allocation15 [shape = 'u8[1024]{0}', space=vmem, size = 0x400, scoped, tag = 'output window, operand 0, single buffered']
    %14 = vsyncpa [#allocation5], 0
    %15 = vsyncpa [#allocation8], 0
    %16 = vsyncpa [#allocation11], 0
    %17 = vsyncpa [#allocation14], 0
    %18 = vsyncpa [#allocation6], 0
    // Predicated region
    $region2: #{tpu_custom_call.1} parent=1 // pred_check
      _
    $region3: #{tpu_custom_call.1} parent=1 // pred_check_branch
      %20 = sbr.rel (0) target = $region5
    $region4: #{tpu_custom_call.1} parent=1 // pred_region
      %s22 = ssub.s32 64, 64
      %23 = vsyncadd [#allocation5], %s22
      %s24 = sshll.u32 [#allocation4], 4
      %s25 = int_to_ptr.vmem [resolvable:$true] %s24
      %30 = dma.hbm_to_vmem [thread:$0]  %s0, 64, %s25, [#allocation5], 32, 32, 2
    $region5: #{tpu_custom_call.1} parent=1 // pred_fallthru
      _
    // Predicated region
    $region6: #{tpu_custom_call.1} parent=1 // pred_check
      _
    $region7: #{tpu_custom_call.1} parent=1 // pred_check_branch
      %32 = sbr.rel (0) target = $region9
    $region8: #{tpu_custom_call.1} parent=1 // pred_region
      %s34 = ssub.s32 64, 64
      %35 = vsyncadd [#allocation8], %s34
      %s36 = sshll.u32 [#allocation7], 4
      %s37 = int_to_ptr.vmem [resolvable:$true] %s36
      %42 = dma.hbm_to_vmem [thread:$0]  %s1, 64, %s37, [#allocation8], 32, 32, 2
    $region9: #{tpu_custom_call.1} parent=1 // pred_fallthru
      _
    // Predicated region
    $region10: #{tpu_custom_call.1} parent=1 // pred_check
      _
    $region11: #{tpu_custom_call.1} parent=1 // pred_check_branch
      %44 = sbr.rel (0) target = $region13
    $region12: #{tpu_custom_call.1} parent=1 // pred_region
      %s46 = ssub.s32 2048, 2048
      %47 = vsyncadd [#allocation8], %s46
      %s48 = sshll.u32 [#allocation9], 4
      %s49 = int_to_ptr.vmem [resolvable:$true] %s48
      %54 = dma.hbm_to_vmem [thread:$0]  %s2, 2048, %s49, [#allocation8], 128, 128, 8
    $region13: #{tpu_custom_call.1} parent=1 // pred_fallthru
      _
    // Predicated region
    $region14: #{tpu_custom_call.1} parent=1 // pred_check
      _
    $region15: #{tpu_custom_call.1} parent=1 // pred_check_branch
      %56 = sbr.rel (0) target = $region17
    $region16: #{tpu_custom_call.1} parent=1 // pred_region
      %s58 = ssub.s32 2048, 2048
      %59 = vsyncadd [#allocation11], %s58
      %s60 = sshll.u32 [#allocation10], 4
      %s61 = int_to_ptr.vmem [resolvable:$true] %s60
      %66 = dma.hbm_to_vmem [thread:$0]  %s3, 2048, %s61, [#allocation11], 128, 128, 8
    $region17: #{tpu_custom_call.1} parent=1 // pred_fallthru
      _
    // Predicated region
    $region18: #{tpu_custom_call.1} parent=1 // pred_check
      _
    $region19: #{tpu_custom_call.1} parent=1 // pred_check_branch
      %68 = sbr.rel (0) target = $region21
    $region20: #{tpu_custom_call.1} parent=1 // pred_region
      _
    $region21: #{tpu_custom_call.1} parent=1 // pred_fallthru
      _
    // Predicated region
    $region22: #{tpu_custom_call.1} parent=1 // pred_check
      _
    $region23: #{tpu_custom_call.1} parent=1 // pred_check_branch
      %70 = sbr.rel (0) target = $region25
    $region24: #{tpu_custom_call.1} parent=1 // pred_region
      %s72 = ssub.s32 2048, 2048
      %73 = vsyncadd [#allocation11], %s72
      %s74 = sshll.u32 [#allocation12], 4
      %s75 = int_to_ptr.vmem [resolvable:$true] %s74
      %80 = dma.hbm_to_vmem [thread:$0]  %s5, 2048, %s75, [#allocation11], 128, 128, 8
    $region25: #{tpu_custom_call.1} parent=1 // pred_fallthru
      _
    // Predicated region
    $region26: #{tpu_custom_call.1} parent=1 // pred_check
      _
    $region27: #{tpu_custom_call.1} parent=1 // pred_check_branch
      %82 = sbr.rel (0) target = $region29
    $region28: #{tpu_custom_call.1} parent=1 // pred_region
      _
    $region29: #{tpu_custom_call.1} parent=1 // pred_fallthru
      _
    // Predicated region
    $region30: #{tpu_custom_call.1} parent=1 // pred_check
      _
    $region31: #{tpu_custom_call.1} parent=1 // pred_check_branch
      %84 = sbr.rel (0) target = $region33
    $region32: #{tpu_custom_call.1} parent=1 // pred_region
      %s86 = ssub.s32 2048, 2048
      %87 = vsyncadd [#allocation14], %s86
      %s88 = sshll.u32 [#allocation13], 4
      %s89 = int_to_ptr.vmem [resolvable:$true] %s88
      %94 = dma.hbm_to_vmem [thread:$0]  %s7, 2048, %s89, [#allocation14], 128, 128, 8
    $region33: #{tpu_custom_call.1} parent=1 // pred_fallthru
      _
    // Predicated region
    $region34: #{tpu_custom_call.1} parent=1 // pred_check
      _
    $region35: #{tpu_custom_call.1} parent=1 // pred_check_branch
      %96 = sbr.rel (0) target = $region37
    $region36: #{tpu_custom_call.1} parent=1 // pred_region
      _
    $region37: #{tpu_custom_call.1} parent=1 // pred_fallthru
      _
    // Predicated region
    $region38: #{tpu_custom_call.1} parent=1 // pred_check
      _
    $region39: #{tpu_custom_call.1} parent=1 // pred_check_branch
      %98 = sbr.rel (0) target = $region41
    $region40: #{tpu_custom_call.1} parent=1 // pred_region
      %99 = dma.done [#allocation5], 64
    $region41: #{tpu_custom_call.1} parent=1 // pred_fallthru
      _
    // Predicated region
    $region42: #{tpu_custom_call.1} parent=1 // pred_check
      _
    $region43: #{tpu_custom_call.1} parent=1 // pred_check_branch
      %101 = sbr.rel (0) target = $region45
    $region44: #{tpu_custom_call.1} parent=1 // pred_region
      %102 = dma.done [#allocation8], 64
    $region45: #{tpu_custom_call.1} parent=1 // pred_fallthru
      _
    // Predicated region
    $region46: #{tpu_custom_call.1} parent=1 // pred_check
      _
    $region47: #{tpu_custom_call.1} parent=1 // pred_check_branch
      %104 = sbr.rel (0) target = $region49
    $region48: #{tpu_custom_call.1} parent=1 // pred_region
      %105 = dma.done [#allocation8], 2048
    $region49: #{tpu_custom_call.1} parent=1 // pred_fallthru
      _
    // Predicated region
    $region50: #{tpu_custom_call.1} parent=1 // pred_check
      _
    $region51: #{tpu_custom_call.1} parent=1 // pred_check_branch
      %107 = sbr.rel (0) target = $region53
    $region52: #{tpu_custom_call.1} parent=1 // pred_region
      %108 = dma.done [#allocation11], 2048
    $region53: #{tpu_custom_call.1} parent=1 // pred_fallthru
      _
    // Predicated region
    $region54: #{tpu_custom_call.1} parent=1 // pred_check
      _
    $region55: #{tpu_custom_call.1} parent=1 // pred_check_branch
      %110 = sbr.rel (0) target = $region57
    $region56: #{tpu_custom_call.1} parent=1 // pred_region
      %111 = dma.done [#allocation11], 2048
    $region57: #{tpu_custom_call.1} parent=1 // pred_fallthru
      _
    // Predicated region
    $region58: #{tpu_custom_call.1} parent=1 // pred_check
      _
    $region59: #{tpu_custom_call.1} parent=1 // pred_check_branch
      %113 = sbr.rel (0) target = $region61
    $region60: #{tpu_custom_call.1} parent=1 // pred_region
      %114 = dma.done [#allocation14], 2048
    $region61: #{tpu_custom_call.1} parent=1 // pred_fallthru
      _
    %p115 = scmp.eq.s32.totalorder 0, 0
    // Predicated region
    $region62: #{tpu_custom_call.1} parent=1 // pred_check
      %p116 = pneg %p115
    $region63: #{tpu_custom_call.1} parent=1 // pred_check_branch
      %118 = sbr.rel (%p116) target = $region65
    $region64: #{tpu_custom_call.1} parent=1 // pred_region
      %119 = vst [vmem:[#allocation2] sm:$0x3] 0.0
      %120 = vst [vmem:[#allocation3] sm:$0x3] 0.0
    $region65: #{tpu_custom_call.1} parent=1 // pred_fallthru
      _
    %v121 = vld [vmem:[#allocation2] sm:$0x3]
    %v122 = vld [vmem:[#allocation4] sm:$0x3]
    %v123 = vld [vmem:[#allocation4 + $0x2] sm:$0x3]
    %vm124 = vcmask 1041408
    %v125 = vsel %vm124, %v122, 0.0
    %v126 = vrot.slane %v125, 4
    %v127 = vadd.f32 %v125, %v126
    %v128 = vrot.slane %v127, 2
    %v129 = vadd.f32 %v127, %v128
    %v130 = vrot.slane %v129, 1
    %v131 = vadd.f32 %v129, %v130
    %v132 = vsel %vm124, %v123, 0.0
    %v133 = vrot.slane %v132, 4
    %v134 = vadd.f32 %v132, %v133
    %v135 = vrot.slane %v134, 2
    %v136 = vadd.f32 %v134, %v135
    %v137 = vrot.slane %v136, 1
    %v138 = vadd.f32 %v136, %v137
    %vm141 = vcmask 1041409
    %v142 = vsel %vm141, %v138, %v131
    %v144 = vadd.f32 %v121, %v142
    %145 = vst [vmem:[#allocation2] sm:$0x3] %v144
    %v146 = vld [vmem:[#allocation3] sm:$0x3]
    %v147 = vld [vmem:[#allocation7] sm:$0x3]
    %v148 = vld [vmem:[#allocation7 + $0x2] sm:$0x3]
    %v149 = vsel %vm124, %v147, 0.0
    %v150 = vrot.slane %v149, 4
    %v151 = vadd.f32 %v149, %v150
    %v152 = vrot.slane %v151, 2
    %v153 = vadd.f32 %v151, %v152
    %v154 = vrot.slane %v153, 1
    %v155 = vadd.f32 %v153, %v154
    %v156 = vsel %vm124, %v148, 0.0
    %v157 = vrot.slane %v156, 4
    %v158 = vadd.f32 %v156, %v157
    %v159 = vrot.slane %v158, 2
    %v160 = vadd.f32 %v158, %v159
    %v161 = vrot.slane %v160, 1
    %v162 = vadd.f32 %v160, %v161
    %v165 = vsel %vm141, %v162, %v155
    %v167 = vadd.f32 %v146, %v165
    %168 = vst [vmem:[#allocation3] sm:$0x3] %v167
    // Predicated region
    $region66: #{tpu_custom_call.1} parent=1 // pred_check
      %p169 = pneg %p115
    $region67: #{tpu_custom_call.1} parent=1 // pred_check_branch
      %171 = sbr.rel (%p169) target = $region69
    $region68: #{tpu_custom_call.1} parent=1 // pred_region
      %v172 = vld [vmem:[#allocation2] sm:$0x3]
      %v173 = vld [vmem:[#allocation9] sm:$0xff]
      %v174 = vld [vmem:[#allocation9 + $0x8] sm:$0xff]
      %v175 = vld [vmem:[#allocation9 + $0x10] sm:$0xff]
      %v176 = vld [vmem:[#allocation9 + $0x18] sm:$0xff]
      %v177 = vld [vmem:[#allocation9 + $0x20] sm:$0xff]
      %v178 = vld [vmem:[#allocation9 + $0x28] sm:$0xff]
      %v179 = vld [vmem:[#allocation9 + $0x30] sm:$0xff]
      %v180 = vld [vmem:[#allocation9 + $0x38] sm:$0xff]
      %v181 = vld [vmem:[#allocation9 + $0x40] sm:$0xff]
      %v182 = vld [vmem:[#allocation9 + $0x48] sm:$0xff]
      %v183 = vld [vmem:[#allocation9 + $0x50] sm:$0xff]
      %v184 = vld [vmem:[#allocation9 + $0x58] sm:$0xff]
      %v185 = vld [vmem:[#allocation9 + $0x60] sm:$0xff]
      %v186 = vld [vmem:[#allocation9 + $0x68] sm:$0xff]
      %v187 = vld [vmem:[#allocation9 + $0x70] sm:$0xff]
      %v188 = vld [vmem:[#allocation9 + $0x78] sm:$0xff]
      %v189 = vld [vmem:[#allocation3] sm:$0x3]
      %v190 = vld [vmem:[#allocation10] sm:$0xff]
      %v191 = vld [vmem:[#allocation10 + $0x8] sm:$0xff]
      %v192 = vld [vmem:[#allocation10 + $0x10] sm:$0xff]
      %v193 = vld [vmem:[#allocation10 + $0x18] sm:$0xff]
      %v194 = vld [vmem:[#allocation10 + $0x20] sm:$0xff]
      %v195 = vld [vmem:[#allocation10 + $0x28] sm:$0xff]
      %v196 = vld [vmem:[#allocation10 + $0x30] sm:$0xff]
      %v197 = vld [vmem:[#allocation10 + $0x38] sm:$0xff]
      %v198 = vld [vmem:[#allocation10 + $0x40] sm:$0xff]
      %v199 = vld [vmem:[#allocation10 + $0x48] sm:$0xff]
      %v200 = vld [vmem:[#allocation10 + $0x50] sm:$0xff]
      %v201 = vld [vmem:[#allocation10 + $0x58] sm:$0xff]
      %v202 = vld [vmem:[#allocation10 + $0x60] sm:$0xff]
      %v203 = vld [vmem:[#allocation10 + $0x68] sm:$0xff]
      %v204 = vld [vmem:[#allocation10 + $0x70] sm:$0xff]
      %v205 = vld [vmem:[#allocation10 + $0x78] sm:$0xff]
      %206 = vmatprep.subr.mxu0 0.0
      %207 = vmatpush1.msra.mxu0 %v190
      %208 = vmatprep.subr.mxu0 0.0
      %209 = vmatpush1.msra.mxu0 %v191
      %210 = vmatprep.subr.mxu0 0.0
      %211 = vmatpush1.msra.mxu0 %v192
      %212 = vmatprep.subr.mxu0 0.0
      %213 = vmatpush1.msra.mxu0 %v193
      %214 = vmatprep.subr.mxu0 0.0
      %215 = vmatpush1.msra.mxu0 %v194
      %216 = vmatprep.subr.mxu0 0.0
      %217 = vmatpush1.msra.mxu0 %v195
      %218 = vmatprep.subr.mxu0 0.0
      %219 = vmatpush1.msra.mxu0 %v196
      %220 = vmatprep.subr.mxu0 0.0
      %221 = vmatpush1.msra.mxu0 %v197
      %222 = vmatprep.subr.mxu0 0.0
      %223 = vmatpush1.msra.mxu0 %v198
      %224 = vmatprep.subr.mxu0 0.0
      %225 = vmatpush1.msra.mxu0 %v199
      %226 = vmatprep.subr.mxu0 0.0
      %227 = vmatpush1.msra.mxu0 %v200
      %228 = vmatprep.subr.mxu0 0.0
      %229 = vmatpush1.msra.mxu0 %v201
      %230 = vmatprep.subr.mxu0 0.0
      %231 = vmatpush1.msra.mxu0 %v202
      %232 = vmatprep.subr.mxu0 0.0
      %233 = vmatpush1.msra.mxu0 %v203
      %234 = vmatprep.subr.mxu0 0.0
      %235 = vmatpush1.msra.mxu0 %v204
      %236 = vmatprep.subr.mxu0 0.0
      %237 = vmatpush1.msra.mxu0 %v205
      %238 = vmatprep.subr.mxu0 0.0
      %239 = vmatpush1.msra.mxu0 0.0
      %240 = vmatprep.subr.mxu0 0.0
      %241 = vmatpush1.msra.mxu0 0.0
      %242 = vmatprep.subr.mxu0 0.0
      %243 = vmatpush1.msra.mxu0 0.0
      %244 = vmatprep.subr.mxu0 0.0
      %245 = vmatpush1.msra.mxu0 0.0
      %246 = vmatprep.subr.mxu0 0.0
      %247 = vmatpush1.msra.mxu0 0.0
      %248 = vmatprep.subr.mxu0 0.0
      %249 = vmatpush1.msra.mxu0 0.0
      %250 = vmatprep.subr.mxu0 0.0
      %251 = vmatpush1.msra.mxu0 0.0
      %252 = vmatprep.subr.mxu0 0.0
      %253 = vmatpush1.msra.mxu0 0.0
      %254 = vmatprep.subr.mxu0 0.0
      %255 = vmatpush1.msra.mxu0 0.0
      %256 = vmatprep.subr.mxu0 0.0
      %257 = vmatpush1.msra.mxu0 0.0
      %258 = vmatprep.subr.mxu0 0.0
      %259 = vmatpush1.msra.mxu0 0.0
      %260 = vmatprep.subr.mxu0 0.0
      %261 = vmatpush1.msra.mxu0 0.0
      %262 = vmatprep.subr.mxu0 0.0
      %263 = vmatpush1.msra.mxu0 0.0
      %264 = vmatprep.subr.mxu0 0.0
      %265 = vmatpush1.msra.mxu0 0.0
      %266 = vmatprep.subr.mxu0 0.0
      %267 = vmatpush1.msra.mxu0 0.0
      %268 = vmatprep.subr.mxu0 0.0
      %269 = vmatpush1.msra.mxu0 0.0
      %270 = vmatprep.mubr.f32.mxu0 0.0
      %271 = vmatmul.mubr.f32.gmra.mrb[0].mxu0 %v189
      %v272 = vpop.f32.mrb[0].mxu0
      %v273 = vadd.f32 0.0, %v272
      %v274 = vpop.f32.mrb[0].mxu0
      %275 = vdwg.mxu0
      %276 = vmatprep.subr.mxu0 0.0
      %277 = vmatpush1.msra.mxu0 %v173
      %278 = vmatprep.subr.mxu0 0.0
      %279 = vmatpush1.msra.mxu0 %v174
      %280 = vmatprep.subr.mxu0 0.0
      %281 = vmatpush1.msra.mxu0 %v175
      %282 = vmatprep.subr.mxu0 0.0
      %283 = vmatpush1.msra.mxu0 %v176
      %284 = vmatprep.subr.mxu0 0.0
      %285 = vmatpush1.msra.mxu0 %v177
      %286 = vmatprep.subr.mxu0 0.0
      %287 = vmatpush1.msra.mxu0 %v178
      %288 = vmatprep.subr.mxu0 0.0
      %289 = vmatpush1.msra.mxu0 %v179
      %290 = vmatprep.subr.mxu0 0.0
      %291 = vmatpush1.msra.mxu0 %v180
      %292 = vmatprep.subr.mxu0 0.0
      %293 = vmatpush1.msra.mxu0 %v181
      %294 = vmatprep.subr.mxu0 0.0
      %295 = vmatpush1.msra.mxu0 %v182
      %296 = vmatprep.subr.mxu0 0.0
      %297 = vmatpush1.msra.mxu0 %v183
      %298 = vmatprep.subr.mxu0 0.0
      %299 = vmatpush1.msra.mxu0 %v184
      %300 = vmatprep.subr.mxu0 0.0
      %301 = vmatpush1.msra.mxu0 %v185
      %302 = vmatprep.subr.mxu0 0.0
      %303 = vmatpush1.msra.mxu0 %v186
      %304 = vmatprep.subr.mxu0 0.0
      %305 = vmatpush1.msra.mxu0 %v187
      %306 = vmatprep.subr.mxu0 0.0
      %307 = vmatpush1.msra.mxu0 %v188
      %308 = vmatprep.subr.mxu0 0.0
      %309 = vmatpush1.msra.mxu0 0.0
      %310 = vmatprep.subr.mxu0 0.0
      %311 = vmatpush1.msra.mxu0 0.0
      %312 = vmatprep.subr.mxu0 0.0
      %313 = vmatpush1.msra.mxu0 0.0
      %314 = vmatprep.subr.mxu0 0.0
      %315 = vmatpush1.msra.mxu0 0.0
      %316 = vmatprep.subr.mxu0 0.0
      %317 = vmatpush1.msra.mxu0 0.0
      %318 = vmatprep.subr.mxu0 0.0
      %319 = vmatpush1.msra.mxu0 0.0
      %320 = vmatprep.subr.mxu0 0.0
      %321 = vmatpush1.msra.mxu0 0.0
      %322 = vmatprep.subr.mxu0 0.0
      %323 = vmatpush1.msra.mxu0 0.0
      %324 = vmatprep.subr.mxu0 0.0
      %325 = vmatpush1.msra.mxu0 0.0
      %326 = vmatprep.subr.mxu0 0.0
      %327 = vmatpush1.msra.mxu0 0.0
      %328 = vmatprep.subr.mxu0 0.0
      %329 = vmatpush1.msra.mxu0 0.0
      %330 = vmatprep.subr.mxu0 0.0
      %331 = vmatpush1.msra.mxu0 0.0
      %332 = vmatprep.subr.mxu0 0.0
      %333 = vmatpush1.msra.mxu0 0.0
      %334 = vmatprep.subr.mxu0 0.0
      %335 = vmatpush1.msra.mxu0 0.0
      %336 = vmatprep.subr.mxu0 0.0
      %337 = vmatpush1.msra.mxu0 0.0
      %338 = vmatprep.subr.mxu0 0.0
      %339 = vmatpush1.msra.mxu0 0.0
      %340 = vmatprep.mubr.f32.mxu0 0.0
      %341 = vmatmul.mubr.f32.gmra.mrb[0].mxu0 %v172
      %v342 = vpop.f32.mrb[0].mxu0
      %v343 = vadd.f32 %v273, %v342
      %v344 = vpop.f32.mrb[0].mxu0
      %345 = vdwg.mxu0
      %v346 = vld [vmem:[%s4] sm:$0x1]
      %v348 = vlaneseq
      %v349 = vshrl.u32 %v348, 7
      %v350 = vsub.s32 0, %v349
      %v351 = vrot.slane %v346, %v350
      %v353 = vadd.f32 %v343, %v351
      %v354 = vmax.f32 %v353, 0.0
      %v355 = vld [vmem:[#allocation12] sm:$0xff]
      %v356 = vld [vmem:[#allocation12 + $0x8] sm:$0xff]
      %v357 = vld [vmem:[#allocation12 + $0x10] sm:$0xff]
      %v358 = vld [vmem:[#allocation12 + $0x18] sm:$0xff]
      %v359 = vld [vmem:[#allocation12 + $0x20] sm:$0xff]
      %v360 = vld [vmem:[#allocation12 + $0x28] sm:$0xff]
      %v361 = vld [vmem:[#allocation12 + $0x30] sm:$0xff]
      %v362 = vld [vmem:[#allocation12 + $0x38] sm:$0xff]
      %v363 = vld [vmem:[#allocation12 + $0x40] sm:$0xff]
      %v364 = vld [vmem:[#allocation12 + $0x48] sm:$0xff]
      %v365 = vld [vmem:[#allocation12 + $0x50] sm:$0xff]
      %v366 = vld [vmem:[#allocation12 + $0x58] sm:$0xff]
      %v367 = vld [vmem:[#allocation12 + $0x60] sm:$0xff]
      %v368 = vld [vmem:[#allocation12 + $0x68] sm:$0xff]
      %v369 = vld [vmem:[#allocation12 + $0x70] sm:$0xff]
      %v370 = vld [vmem:[#allocation12 + $0x78] sm:$0xff]
      %v371 = vld [vmem:[%s6] sm:$0x1]
      %v373 = vlaneseq
      %v374 = vshrl.u32 %v373, 7
      %v375 = vsub.s32 0, %v374
      %v376 = vrot.slane %v371, %v375
      %378 = vmatprep.subr.mxu0 0.0
      %379 = vmatpush1.msra.mxu0 %v355
      %380 = vmatprep.subr.mxu0 0.0
      %381 = vmatpush1.msra.mxu0 %v356
      %382 = vmatprep.subr.mxu0 0.0
      %383 = vmatpush1.msra.mxu0 %v357
      %384 = vmatprep.subr.mxu0 0.0
      %385 = vmatpush1.msra.mxu0 %v358
      %386 = vmatprep.subr.mxu0 0.0
      %387 = vmatpush1.msra.mxu0 %v359
      %388 = vmatprep.subr.mxu0 0.0
      %389 = vmatpush1.msra.mxu0 %v360
      %390 = vmatprep.subr.mxu0 0.0
      %391 = vmatpush1.msra.mxu0 %v361
      %392 = vmatprep.subr.mxu0 0.0
      %393 = vmatpush1.msra.mxu0 %v362
      %394 = vmatprep.subr.mxu0 0.0
      %395 = vmatpush1.msra.mxu0 %v363
      %396 = vmatprep.subr.mxu0 0.0
      %397 = vmatpush1.msra.mxu0 %v364
      %398 = vmatprep.subr.mxu0 0.0
      %399 = vmatpush1.msra.mxu0 %v365
      %400 = vmatprep.subr.mxu0 0.0
      %401 = vmatpush1.msra.mxu0 %v366
      %402 = vmatprep.subr.mxu0 0.0
      %403 = vmatpush1.msra.mxu0 %v367
      %404 = vmatprep.subr.mxu0 0.0
      %405 = vmatpush1.msra.mxu0 %v368
      %406 = vmatprep.subr.mxu0 0.0
      %407 = vmatpush1.msra.mxu0 %v369
      %408 = vmatprep.subr.mxu0 0.0
      %409 = vmatpush1.msra.mxu0 %v370
      %410 = vmatprep.subr.mxu0 0.0
      %411 = vmatpush1.msra.mxu0 0.0
      %412 = vmatprep.subr.mxu0 0.0
      %413 = vmatpush1.msra.mxu0 0.0
      %414 = vmatprep.subr.mxu0 0.0
      %415 = vmatpush1.msra.mxu0 0.0
      %416 = vmatprep.subr.mxu0 0.0
      %417 = vmatpush1.msra.mxu0 0.0
      %418 = vmatprep.subr.mxu0 0.0
      %419 = vmatpush1.msra.mxu0 0.0
      %420 = vmatprep.subr.mxu0 0.0
      %421 = vmatpush1.msra.mxu0 0.0
      %422 = vmatprep.subr.mxu0 0.0
      %423 = vmatpush1.msra.mxu0 0.0
      %424 = vmatprep.subr.mxu0 0.0
      %425 = vmatpush1.msra.mxu0 0.0
      %426 = vmatprep.subr.mxu0 0.0
      %427 = vmatpush1.msra.mxu0 0.0
      %428 = vmatprep.subr.mxu0 0.0
      %429 = vmatpush1.msra.mxu0 0.0
      %430 = vmatprep.subr.mxu0 0.0
      %431 = vmatpush1.msra.mxu0 0.0
      %432 = vmatprep.subr.mxu0 0.0
      %433 = vmatpush1.msra.mxu0 0.0
      %434 = vmatprep.subr.mxu0 0.0
      %435 = vmatpush1.msra.mxu0 0.0
      %436 = vmatprep.subr.mxu0 0.0
      %437 = vmatpush1.msra.mxu0 0.0
      %438 = vmatprep.subr.mxu0 0.0
      %439 = vmatpush1.msra.mxu0 0.0
      %440 = vmatprep.subr.mxu0 0.0
      %441 = vmatpush1.msra.mxu0 0.0
      %442 = vmatprep.mubr.f32.mxu0 0.0
      %443 = vmatmul.mubr.f32.gmra.mrb[0].mxu0 %v354
      %v444 = vpop.f32.mrb[0].mxu0
      %v445 = vadd.f32 %v376, %v444
      %v446 = vpop.f32.mrb[0].mxu0
      %447 = vdwg.mxu0
      %v448 = vmax.f32 %v445, 0.0
      %v449 = vld [vmem:[#allocation13] sm:$0xff]
      %v450 = vld [vmem:[#allocation13 + $0x8] sm:$0xff]
      %v451 = vld [vmem:[#allocation13 + $0x10] sm:$0xff]
      %v452 = vld [vmem:[#allocation13 + $0x18] sm:$0xff]
      %v453 = vld [vmem:[#allocation13 + $0x20] sm:$0xff]
      %v454 = vld [vmem:[#allocation13 + $0x28] sm:$0xff]
      %v455 = vld [vmem:[#allocation13 + $0x30] sm:$0xff]
      %v456 = vld [vmem:[#allocation13 + $0x38] sm:$0xff]
      %v457 = vld [vmem:[#allocation13 + $0x40] sm:$0xff]
      %v458 = vld [vmem:[#allocation13 + $0x48] sm:$0xff]
      %v459 = vld [vmem:[#allocation13 + $0x50] sm:$0xff]
      %v460 = vld [vmem:[#allocation13 + $0x58] sm:$0xff]
      %v461 = vld [vmem:[#allocation13 + $0x60] sm:$0xff]
      %v462 = vld [vmem:[#allocation13 + $0x68] sm:$0xff]
      %v463 = vld [vmem:[#allocation13 + $0x70] sm:$0xff]
      %v464 = vld [vmem:[#allocation13 + $0x78] sm:$0xff]
      %v465 = vld [vmem:[%s8] sm:$0x1]
      %v467 = vlaneseq
      %v468 = vshrl.u32 %v467, 7
      %v469 = vsub.s32 0, %v468
      %v470 = vrot.slane %v465, %v469
      %472 = vmatprep.subr.mxu0 0.0
      %473 = vmatpush1.msra.mxu0 %v449
      %474 = vmatprep.subr.mxu0 0.0
      %475 = vmatpush1.msra.mxu0 %v450
      %476 = vmatprep.subr.mxu0 0.0
      %477 = vmatpush1.msra.mxu0 %v451
      %478 = vmatprep.subr.mxu0 0.0
      %479 = vmatpush1.msra.mxu0 %v452
      %480 = vmatprep.subr.mxu0 0.0
      %481 = vmatpush1.msra.mxu0 %v453
      %482 = vmatprep.subr.mxu0 0.0
      %483 = vmatpush1.msra.mxu0 %v454
      %484 = vmatprep.subr.mxu0 0.0
      %485 = vmatpush1.msra.mxu0 %v455
      %486 = vmatprep.subr.mxu0 0.0
      %487 = vmatpush1.msra.mxu0 %v456
      %488 = vmatprep.subr.mxu0 0.0
      %489 = vmatpush1.msra.mxu0 %v457
      %490 = vmatprep.subr.mxu0 0.0
      %491 = vmatpush1.msra.mxu0 %v458
      %492 = vmatprep.subr.mxu0 0.0
      %493 = vmatpush1.msra.mxu0 %v459
      %494 = vmatprep.subr.mxu0 0.0
      %495 = vmatpush1.msra.mxu0 %v460
      %496 = vmatprep.subr.mxu0 0.0
      %497 = vmatpush1.msra.mxu0 %v461
      %498 = vmatprep.subr.mxu0 0.0
      %499 = vmatpush1.msra.mxu0 %v462
      %500 = vmatprep.subr.mxu0 0.0
      %501 = vmatpush1.msra.mxu0 %v463
      %502 = vmatprep.subr.mxu0 0.0
      %503 = vmatpush1.msra.mxu0 %v464
      %504 = vmatprep.subr.mxu0 0.0
      %505 = vmatpush1.msra.mxu0 0.0
      %506 = vmatprep.subr.mxu0 0.0
      %507 = vmatpush1.msra.mxu0 0.0
      %508 = vmatprep.subr.mxu0 0.0
      %509 = vmatpush1.msra.mxu0 0.0
      %510 = vmatprep.subr.mxu0 0.0
      %511 = vmatpush1.msra.mxu0 0.0
      %512 = vmatprep.subr.mxu0 0.0
      %513 = vmatpush1.msra.mxu0 0.0
      %514 = vmatprep.subr.mxu0 0.0
      %515 = vmatpush1.msra.mxu0 0.0
      %516 = vmatprep.subr.mxu0 0.0
      %517 = vmatpush1.msra.mxu0 0.0
      %518 = vmatprep.subr.mxu0 0.0
      %519 = vmatpush1.msra.mxu0 0.0
      %520 = vmatprep.subr.mxu0 0.0
      %521 = vmatpush1.msra.mxu0 0.0
      %522 = vmatprep.subr.mxu0 0.0
      %523 = vmatpush1.msra.mxu0 0.0
      %524 = vmatprep.subr.mxu0 0.0
      %525 = vmatpush1.msra.mxu0 0.0
      %526 = vmatprep.subr.mxu0 0.0
      %527 = vmatpush1.msra.mxu0 0.0
      %528 = vmatprep.subr.mxu0 0.0
      %529 = vmatpush1.msra.mxu0 0.0
      %530 = vmatprep.subr.mxu0 0.0
      %531 = vmatpush1.msra.mxu0 0.0
      %532 = vmatprep.subr.mxu0 0.0
      %533 = vmatpush1.msra.mxu0 0.0
      %534 = vmatprep.subr.mxu0 0.0
      %535 = vmatpush1.msra.mxu0 0.0
      %536 = vmatprep.mubr.f32.mxu0 0.0
      %537 = vmatmul.mubr.f32.gmra.mrb[0].mxu0 %v448
      %v538 = vpop.f32.mrb[0].mxu0
      %v539 = vadd.f32 %v470, %v538
      %v540 = vpop.f32.mrb[0].mxu0
      %541 = vdwg.mxu0
      %542 = vst [vmem:[#allocation15] sm:$0x3] %v539
    $region69: #{tpu_custom_call.1} parent=1 // pred_fallthru
      _
    // Predicated region
    $region70: #{tpu_custom_call.1} parent=1 // pred_check
      _
    $region71: #{tpu_custom_call.1} parent=1 // pred_check_branch
      %544 = sbr.rel (0) target = $region73
    $region72: #{tpu_custom_call.1} parent=1 // pred_region
      %s546 = ssub.s32 32, 32
      %547 = vsyncadd [#allocation6], %s546
      %s549 = sshll.u32 [#allocation15], 4
      %s550 = int_to_ptr.vmem [resolvable:$true] %s549
      %552 = dma.vmem_to_hbm [thread:$0]  %s550, 32, %s9, [#allocation6]
    $region73: #{tpu_custom_call.1} parent=1 // pred_fallthru
      _
    // Predicated region
    $region74: #{tpu_custom_call.1} parent=1 // pred_check
      _
    $region75: #{tpu_custom_call.1} parent=1 // pred_check_branch
      %554 = sbr.rel (0) target = $region77
    $region76: #{tpu_custom_call.1} parent=1 // pred_region
      %555 = dma.done [#allocation6], 32
    $region77: #{tpu_custom_call.1} parent=1 // pred_fallthru
      _
    %556 = vsyncpa [#allocation5], 1
    %557 = vsyncpa [#allocation8], 1
    %558 = vsyncpa [#allocation11], 1
    %559 = vsyncpa [#allocation14], 1
    %560 = vsyncpa [#allocation6], 1

</llo_original>
